<compile_context>
chip_gen: v6e
topology: v6e:2x2x1
jax: 0.10.0
libtpu: 0.0.40
codegen_flags: <defaults>
</compile_context>

<pallas_src>
import jax
import jax.numpy as jnp
from jax import lax
from jax.experimental import pallas as pl
from jax.experimental.pallas import tpu as pltpu


def se_bottleneck_pallas(x_nchw, params):
    """x_nchw: (N, Cin, H, W) f32.  Returns (N, C4, H, W) f32."""
    N, Cin, H, W = x_nchw.shape
    P = params['w1'].shape[1]
    C4 = params['w3'].shape[1]
    assert Cin == C4, "downsample=None (identity residual) requires inplanes == planes*4"
    HW = H * W
    NHW = N * HW
    f32, bf16 = jnp.float32, jnp.bfloat16

    # ---- layout plumbing + BN folding (outside the kernel) ---------------------------
    # channels -> sublanes, flattened (n, h, w) -> lanes
    x_t = x_nchw.transpose(1, 0, 2, 3).reshape(Cin, NHW).astype(f32)         # (Cin, NHW)

    bn1s = params['bn1_scale'].reshape(P, 1).astype(f32)
    bn1b = params['bn1_shift'].reshape(P, 1).astype(f32)
    bn2s = params['bn2_scale'].reshape(P, 1).astype(f32)
    bn2b = params['bn2_shift'].reshape(P, 1).astype(f32)
    bn3s = params['bn3_scale'].reshape(C4, 1).astype(f32)
    bn3b = params['bn3_shift'].reshape(C4, 1).astype(f32)

    # conv1: (Cin, P) -> (P, Cin), BN1 scale folded per output channel (row)
    w1_k = (params['w1'].T * bn1s).astype(bf16)                               # (P, Cin)
    # conv2: HWIO (ky, kx, i, o) -> (o, ky, kx, i) -> (P, 9*P); tap index t = ky*3 + kx
    w2_k = (params['w2'].transpose(3, 0, 1, 2).reshape(P, 9 * P) * bn2s).astype(bf16)
    # conv3: (P, C4) -> (C4, P), BN3 scale folded per output channel (row)
    w3_k = (params['w3'].T * bn3s).astype(bf16)                               # (C4, P)
    wfc1_k = params['wfc1'].T.astype(f32)                                     # (Cr, C4)
    wfc2_k = params['wfc2'].T.astype(f32)                                     # (C4, Cr)

    # 'SAME' zero-padding masks for the 9 taps of the 3x3 conv over the flat (n,h,w) axis
    r = jnp.arange(NHW)
    w_pos = r % W
    h_pos = (r // W) % H
    mrows = []
    for dy in (-1, 0, 1):
        for dx in (-1, 0, 1):
            hh, ww = h_pos + dy, w_pos + dx
            mrows.append(((hh >= 0) & (hh < H) & (ww >= 0) & (ww < W)).astype(f32))
    masks = jnp.stack(mrows, axis=0)                                          # (9, NHW)

    # per-image average-pool and broadcast-back matrices for the SE block
    img = r // HW
    pool_mat = (img[:, None] == jnp.arange(N)[None, :]).astype(f32) / HW      # (NHW, N)
    sel_mat = (jnp.arange(N)[:, None] == img[None, :]).astype(f32)            # (N, NHW)

    # ---- fused kernel ----------------------------------------------------------------
    def kernel(x_ref, mask_ref, pool_ref, sel_ref, w1_ref, w2_ref, w3_ref,
               bn1b_ref, bn2b_ref, bn3b_ref, wfc1_ref, wfc2_ref, o_ref):
        x = x_ref[...]                                                        # (Cin, NHW) f32

        # conv1 (1x1, BN1 scale pre-folded) + shift + relu : one MXU matmul
        y1 = jnp.dot(w1_ref[...], x.astype(bf16), preferred_element_type=f32)
        t1 = jnp.maximum(y1 + bn1b_ref[...], 0.0)                             # (P, NHW) f32

        # conv2 (3x3, stride 1, pad 1) : im2col via XLU lane-rolls -> single matmul (K=9P)
        masks_v = mask_ref[...]                                               # (9, NHW) f32
        pieces = []
        tap = 0
        for dy in (-1, 0, 1):
            for dx in (-1, 0, 1):
                if (dy, dx) == (0, 0):
                    pieces.append(t1)                                         # center tap
                else:
                    off = dy * W + dx                                         # flat-axis offset
                    rolled = pltpu.roll(t1, shift=(-off) % NHW, axis=1)       # XLU lane roll
                    pieces.append(rolled * masks_v[tap:tap + 1, :])           # zero padding
                tap += 1
        cols = jnp.concatenate(pieces, axis=0).astype(bf16)                   # (9P, NHW)
        y2 = jnp.dot(w2_ref[...], cols, preferred_element_type=f32)           # (P, NHW)
        t2 = jnp.maximum(y2 + bn2b_ref[...], 0.0)

        # conv3 (1x1, BN3 scale pre-folded) + shift (no relu before SE)
        y3 = jnp.dot(w3_ref[...], t2.astype(bf16), preferred_element_type=f32)
        y3 = y3 + bn3b_ref[...]                                               # (C4, NHW) f32

        # SE: per-image global avg pool -> fc1 -> relu -> fc2 -> sigmoid (all f32)
        pooled = jnp.dot(y3, pool_ref[...], preferred_element_type=f32)       # (C4, N)
        hidden = jnp.maximum(
            jnp.dot(wfc1_ref[...], pooled, preferred_element_type=f32), 0.0)  # (Cr, N)
        z = jnp.dot(wfc2_ref[...], hidden, preferred_element_type=f32)        # (C4, N)
        gate = pl.reciprocal(1.0 + jnp.exp(-z), approx=True)                  # sigmoid
        gate_cols = jnp.dot(gate, sel_ref[...], preferred_element_type=f32)   # (C4, NHW)

        # channel scale, identity residual, final relu : one lane-dense slab store
        o_ref[...] = jnp.maximum(y3 * gate_cols + x, 0.0)

    # ---- pallas_call -------------------------------------------------------------------
    def fs(shape):
        nd = len(shape)
        return pl.BlockSpec(shape, lambda i, _nd=nd: (0,) * _nd)

    operands = (x_t, masks, pool_mat, sel_mat, w1_k, w2_k, w3_k,
                bn1b, bn2b, bn3b, wfc1_k, wfc2_k)

    grid_spec = pltpu.PrefetchScalarGridSpec(
        num_scalar_prefetch=0,
        grid=(1,),                                   # whole batch in one grid step
        in_specs=[fs(op.shape) for op in operands],
        out_specs=fs((C4, NHW)),
    )

    out_t = pl.pallas_call(
        kernel,
        out_shape=jax.ShapeDtypeStruct((C4, NHW), f32),
        grid_spec=grid_spec,
        compiler_params=pltpu.CompilerParams(dimension_semantics=("parallel",)),
    )(*operands)

    return out_t.reshape(C4, N, H, W).transpose(1, 0, 2, 3)                   # back to NCHW


def make_params(key, inplanes, planes, reduction=16, eps=1e-5):
    """Deterministic synthetic params (BN folded to scale/shift, eval mode)."""
    C4 = planes * 4
    Cr = max(C4 // reduction, 1)
    keys = jax.random.split(key, 17)

    def u(k, shape, scale=0.2):
        return jax.random.uniform(k, shape, jnp.float32, -1.0, 1.0) * scale

    def bn_fold(kg, kb, km, kv, c):
        gamma = 1.0 + u(kg, (1, c), 0.1)
        beta = u(kb, (1, c), 0.1)
        mean = u(km, (1, c), 0.1)
        var = 1.0 + 0.5 * jax.random.uniform(kv, (1, c), jnp.float32)
        scale = gamma / jnp.sqrt(var + eps)
        shift = beta - mean * scale
        return scale, shift

    w1 = u(keys[0], (inplanes, planes))        # conv1: OIHW (P,Cin,1,1) -> (Cin, P)
    w2 = u(keys[1], (3, 3, planes, planes))    # conv2: OIHW (P,P,3,3) -> HWIO (3,3,P,P)
    w3 = u(keys[2], (planes, C4))              # conv3: OIHW (C4,P,1,1) -> (P, C4)
    wfc1 = u(keys[3], (C4, Cr))                # Linear(C4, Cr).weight.T
    wfc2 = u(keys[4], (Cr, C4))                # Linear(Cr, C4).weight.T

    bn1_scale, bn1_shift = bn_fold(keys[5], keys[6], keys[7], keys[8], planes)
    bn2_scale, bn2_shift = bn_fold(keys[9], keys[10], keys[11], keys[12], planes)
    bn3_scale, bn3_shift = bn_fold(keys[13], keys[14], keys[15], keys[16], C4)

    return dict(w1=w1, w2=w2, w3=w3, wfc1=wfc1, wfc2=wfc2,
                bn1_scale=bn1_scale, bn1_shift=bn1_shift,
                bn2_scale=bn2_scale, bn2_shift=bn2_shift,
                bn3_scale=bn3_scale, bn3_shift=bn3_shift)


def se_bottleneck_ref(x_nhwc, params):
    """Pure-JAX f32 reference (same semantics as the PyTorch forward, BN in eval mode)."""
    t = jnp.einsum('nhwc,cp->nhwp', x_nhwc, params['w1'])
    t = jnp.maximum(t * params['bn1_scale'] + params['bn1_shift'], 0.0)
    t = lax.conv_general_dilated(t, params['w2'], (1, 1), 'SAME',
                                 dimension_numbers=('NHWC', 'HWIO', 'NHWC'))
    t = jnp.maximum(t * params['bn2_scale'] + params['bn2_shift'], 0.0)
    t = jnp.einsum('nhwp,pc->nhwc', t, params['w3'])
    t = t * params['bn3_scale'] + params['bn3_shift']
    pooled = jnp.mean(t, axis=(1, 2))                                    # (N, C4)
    g = jax.nn.sigmoid(jnp.maximum(pooled @ params['wfc1'], 0.0) @ params['wfc2'])
    out = t * g[:, None, None, :] + x_nhwc
    return jnp.maximum(out, 0.0)


if __name__ == "__main__":
    key = jax.random.PRNGKey(0)
    kx, kp = jax.random.split(key)

    # SEBottleneck(inplanes=32, planes=8): out channels = 8*4 = 32 == inplanes,
    # so downsample=None / identity residual is shape-consistent. N*H*W = 128 lanes.
    N, Cin, H, W = 2, 32, 8, 8
    planes = 8

    x_nchw = jax.random.normal(kx, (N, Cin, H, W), jnp.float32)          # PyTorch NCHW input
    params = make_params(kp, Cin, planes, reduction=16)

    out_nchw = jax.block_until_ready(se_bottleneck_pallas(x_nchw, params))

    x_nhwc = jnp.transpose(x_nchw, (0, 2, 3, 1))
    ref_nchw = jnp.transpose(se_bottleneck_ref(x_nhwc, params), (0, 3, 1, 2))
    err = float(jnp.max(jnp.abs(out_nchw - ref_nchw)))
    # bf16 conv matmul operands (f32 accumulation) vs. the f32 reference -> bf16-level tolerance
    assert err < 3e-2, f"kernel/reference mismatch: max abs err = {err}"
    print("KERNEL_OK")
</pallas_src>

<mosaic_0001>
module attributes {stable_mosaic.version = 11 : i64} {
  func.func @kernel(%arg0: i32, %arg1: memref<32x128xf32, #tpu.memory_space<vmem>>, %arg2: memref<9x128xf32, #tpu.memory_space<vmem>>, %arg3: memref<128x2xf32, #tpu.memory_space<vmem>>, %arg4: memref<2x128xf32, #tpu.memory_space<vmem>>, %arg5: memref<8x32xbf16, #tpu.memory_space<vmem>>, %arg6: memref<8x72xbf16, #tpu.memory_space<vmem>>, %arg7: memref<32x8xbf16, #tpu.memory_space<vmem>>, %arg8: memref<8x1xf32, #tpu.memory_space<vmem>>, %arg9: memref<8x1xf32, #tpu.memory_space<vmem>>, %arg10: memref<32x1xf32, #tpu.memory_space<vmem>>, %arg11: memref<2x32xf32, #tpu.memory_space<vmem>>, %arg12: memref<32x2xf32, #tpu.memory_space<vmem>>, %arg13: memref<32x128xf32, #tpu.memory_space<vmem>>) attributes {dimension_semantics = [#tpu.dimension_semantics<parallel>], iteration_bounds = array<i64: 1>, scalar_prefetch = 0 : i64, scratch_operands = 0 : i64, tpu.core_type = #tpu.core_type<tc>, window_params = [{pipeline_mode = #tpu.pipeline_mode<synchronous>, transform_indices = @transform_0, window_bounds = array<i64: 32, 128>}, {pipeline_mode = #tpu.pipeline_mode<synchronous>, transform_indices = @transform_1, window_bounds = array<i64: 9, 128>}, {pipeline_mode = #tpu.pipeline_mode<synchronous>, transform_indices = @transform_2, window_bounds = array<i64: 128, 2>}, {pipeline_mode = #tpu.pipeline_mode<synchronous>, transform_indices = @transform_3, window_bounds = array<i64: 2, 128>}, {pipeline_mode = #tpu.pipeline_mode<synchronous>, transform_indices = @transform_4, window_bounds = array<i64: 8, 32>}, {pipeline_mode = #tpu.pipeline_mode<synchronous>, transform_indices = @transform_5, window_bounds = array<i64: 8, 72>}, {pipeline_mode = #tpu.pipeline_mode<synchronous>, transform_indices = @transform_6, window_bounds = array<i64: 32, 8>}, {pipeline_mode = #tpu.pipeline_mode<synchronous>, transform_indices = @transform_7, window_bounds = array<i64: 8, 1>}, {pipeline_mode = #tpu.pipeline_mode<synchronous>, transform_indices = @transform_8, window_bounds = array<i64: 8, 1>}, {pipeline_mode = #tpu.pipeline_mode<synchronous>, transform_indices = @transform_9, window_bounds = array<i64: 32, 1>}, {pipeline_mode = #tpu.pipeline_mode<synchronous>, transform_indices = @transform_10, window_bounds = array<i64: 2, 32>}, {pipeline_mode = #tpu.pipeline_mode<synchronous>, transform_indices = @transform_11, window_bounds = array<i64: 32, 2>}, {pipeline_mode = #tpu.pipeline_mode<synchronous>, transform_indices = @transform_12, window_bounds = array<i64: 32, 128>}]} {
    %c0 = arith.constant 0 : index
    %c0_0 = arith.constant 0 : index
    %0 = vector.load %arg1[%c0, %c0_0] : memref<32x128xf32, #tpu.memory_space<vmem>>, vector<32x128xf32>
    %c0_1 = arith.constant 0 : index
    %c0_2 = arith.constant 0 : index
    %1 = vector.load %arg5[%c0_1, %c0_2] : memref<8x32xbf16, #tpu.memory_space<vmem>>, vector<8x32xbf16>
    %2 = arith.truncf %0 : vector<32x128xf32> to vector<32x128xbf16>
    %cst = arith.constant dense<0.000000e+00> : vector<8x128xf32>
    %3 = tpu.matmul %1, %2, %cst {dimension_numbers = #tpu.dot_dimension_numbers<[1], [0], [0], [1], [0, 0, 1, 1], [], []>} : vector<8x32xbf16>, vector<32x128xbf16>, vector<8x128xf32> -> vector<8x128xf32>
    %c0_3 = arith.constant 0 : index
    %c0_4 = arith.constant 0 : index
    %4 = vector.load %arg8[%c0_3, %c0_4] : memref<8x1xf32, #tpu.memory_space<vmem>>, vector<8x1xf32>
    %5 = vector.broadcast %4 : vector<8x1xf32> to vector<8x128xf32>
    %6 = arith.addf %3, %5 : vector<8x128xf32>
    %cst_5 = arith.constant 0.000000e+00 : f32
    %7 = vector.broadcast %cst_5 : f32 to vector<8x128xf32>
    %8 = arith.maximumf %6, %7 : vector<8x128xf32>
    %c0_6 = arith.constant 0 : index
    %c0_7 = arith.constant 0 : index
    %9 = vector.load %arg2[%c0_6, %c0_7] : memref<9x128xf32, #tpu.memory_space<vmem>>, vector<9x128xf32>
    %c9_i32 = arith.constant 9 : i32
    %10 = tpu.dynamic_rotate %8 by %c9_i32 dim 1 : vector<8x128xf32>, i32 -> vector<8x128xf32>
    %11 = vector.extract_strided_slice %9 {offsets = [0, 0], sizes = [1, 128], strides = [1, 1]} : vector<9x128xf32> to vector<1x128xf32>
    %12 = vector.broadcast %11 : vector<1x128xf32> to vector<8x128xf32>
    %13 = arith.mulf %10, %12 : vector<8x128xf32>
    %c8_i32 = arith.constant 8 : i32
    %14 = tpu.dynamic_rotate %8 by %c8_i32 dim 1 : vector<8x128xf32>, i32 -> vector<8x128xf32>
    %15 = vector.extract_strided_slice %9 {offsets = [1, 0], sizes = [1, 128], strides = [1, 1]} : vector<9x128xf32> to vector<1x128xf32>
    %16 = vector.broadcast %15 : vector<1x128xf32> to vector<8x128xf32>
    %17 = arith.mulf %14, %16 : vector<8x128xf32>
    %c7_i32 = arith.constant 7 : i32
    %18 = tpu.dynamic_rotate %8 by %c7_i32 dim 1 : vector<8x128xf32>, i32 -> vector<8x128xf32>
    %19 = vector.extract_strided_slice %9 {offsets = [2, 0], sizes = [1, 128], strides = [1, 1]} : vector<9x128xf32> to vector<1x128xf32>
    %20 = vector.broadcast %19 : vector<1x128xf32> to vector<8x128xf32>
    %21 = arith.mulf %18, %20 : vector<8x128xf32>
    %c1_i32 = arith.constant 1 : i32
    %22 = tpu.dynamic_rotate %8 by %c1_i32 dim 1 : vector<8x128xf32>, i32 -> vector<8x128xf32>
    %23 = vector.extract_strided_slice %9 {offsets = [3, 0], sizes = [1, 128], strides = [1, 1]} : vector<9x128xf32> to vector<1x128xf32>
    %24 = vector.broadcast %23 : vector<1x128xf32> to vector<8x128xf32>
    %25 = arith.mulf %22, %24 : vector<8x128xf32>
    %c127_i32 = arith.constant 127 : i32
    %26 = tpu.dynamic_rotate %8 by %c127_i32 dim 1 : vector<8x128xf32>, i32 -> vector<8x128xf32>
    %27 = vector.extract_strided_slice %9 {offsets = [5, 0], sizes = [1, 128], strides = [1, 1]} : vector<9x128xf32> to vector<1x128xf32>
    %28 = vector.broadcast %27 : vector<1x128xf32> to vector<8x128xf32>
    %29 = arith.mulf %26, %28 : vector<8x128xf32>
    %c121_i32 = arith.constant 121 : i32
    %30 = tpu.dynamic_rotate %8 by %c121_i32 dim 1 : vector<8x128xf32>, i32 -> vector<8x128xf32>
    %31 = vector.extract_strided_slice %9 {offsets = [6, 0], sizes = [1, 128], strides = [1, 1]} : vector<9x128xf32> to vector<1x128xf32>
    %32 = vector.broadcast %31 : vector<1x128xf32> to vector<8x128xf32>
    %33 = arith.mulf %30, %32 : vector<8x128xf32>
    %c120_i32 = arith.constant 120 : i32
    %34 = tpu.dynamic_rotate %8 by %c120_i32 dim 1 : vector<8x128xf32>, i32 -> vector<8x128xf32>
    %35 = vector.extract_strided_slice %9 {offsets = [7, 0], sizes = [1, 128], strides = [1, 1]} : vector<9x128xf32> to vector<1x128xf32>
    %36 = vector.broadcast %35 : vector<1x128xf32> to vector<8x128xf32>
    %37 = arith.mulf %34, %36 : vector<8x128xf32>
    %c119_i32 = arith.constant 119 : i32
    %38 = tpu.dynamic_rotate %8 by %c119_i32 dim 1 : vector<8x128xf32>, i32 -> vector<8x128xf32>
    %39 = vector.extract_strided_slice %9 {offsets = [8, 0], sizes = [1, 128], strides = [1, 1]} : vector<9x128xf32> to vector<1x128xf32>
    %40 = vector.broadcast %39 : vector<1x128xf32> to vector<8x128xf32>
    %41 = arith.mulf %38, %40 : vector<8x128xf32>
    %42 = tpu.concatenate %13, %17, %21, %25, %8, %29, %33, %37, %41 in 0 : vector<8x128xf32>, vector<8x128xf32>, vector<8x128xf32>, vector<8x128xf32>, vector<8x128xf32>, vector<8x128xf32>, vector<8x128xf32>, vector<8x128xf32>, vector<8x128xf32> -> vector<72x128xf32>
    %43 = arith.truncf %42 : vector<72x128xf32> to vector<72x128xbf16>
    %c0_8 = arith.constant 0 : index
    %c0_9 = arith.constant 0 : index
    %44 = vector.load %arg6[%c0_8, %c0_9] : memref<8x72xbf16, #tpu.memory_space<vmem>>, vector<8x72xbf16>
    %cst_10 = arith.constant dense<0.000000e+00> : vector<8x128xf32>
    %45 = tpu.matmul %44, %43, %cst_10 {dimension_numbers = #tpu.dot_dimension_numbers<[1], [0], [0], [1], [0, 0, 1, 1], [], []>} : vector<8x72xbf16>, vector<72x128xbf16>, vector<8x128xf32> -> vector<8x128xf32>
    %c0_11 = arith.constant 0 : index
    %c0_12 = arith.constant 0 : index
    %46 = vector.load %arg9[%c0_11, %c0_12] : memref<8x1xf32, #tpu.memory_space<vmem>>, vector<8x1xf32>
    %47 = vector.broadcast %46 : vector<8x1xf32> to vector<8x128xf32>
    %48 = arith.addf %45, %47 : vector<8x128xf32>
    %cst_13 = arith.constant 0.000000e+00 : f32
    %49 = vector.broadcast %cst_13 : f32 to vector<8x128xf32>
    %50 = arith.maximumf %48, %49 : vector<8x128xf32>
    %c0_14 = arith.constant 0 : index
    %c0_15 = arith.constant 0 : index
    %51 = vector.load %arg7[%c0_14, %c0_15] : memref<32x8xbf16, #tpu.memory_space<vmem>>, vector<32x8xbf16>
    %52 = arith.truncf %50 : vector<8x128xf32> to vector<8x128xbf16>
    %cst_16 = arith.constant dense<0.000000e+00> : vector<32x128xf32>
    %53 = tpu.matmul %51, %52, %cst_16 {dimension_numbers = #tpu.dot_dimension_numbers<[1], [0], [0], [1], [0, 0, 1, 1], [], []>} : vector<32x8xbf16>, vector<8x128xbf16>, vector<32x128xf32> -> vector<32x128xf32>
    %c0_17 = arith.constant 0 : index
    %c0_18 = arith.constant 0 : index
    %54 = vector.load %arg10[%c0_17, %c0_18] : memref<32x1xf32, #tpu.memory_space<vmem>>, vector<32x1xf32>
    %55 = vector.broadcast %54 : vector<32x1xf32> to vector<32x128xf32>
    %56 = arith.addf %53, %55 : vector<32x128xf32>
    %c0_19 = arith.constant 0 : index
    %c0_20 = arith.constant 0 : index
    %57 = vector.load %arg3[%c0_19, %c0_20] : memref<128x2xf32, #tpu.memory_space<vmem>>, vector<128x2xf32>
    %cst_21 = arith.constant dense<0.000000e+00> : vector<32x2xf32>
    %58 = tpu.matmul %56, %57, %cst_21 {dimension_numbers = #tpu.dot_dimension_numbers<[1], [0], [0], [1], [0, 0, 1, 1], [], []>} : vector<32x128xf32>, vector<128x2xf32>, vector<32x2xf32> -> vector<32x2xf32>
    %c0_22 = arith.constant 0 : index
    %c0_23 = arith.constant 0 : index
    %59 = vector.load %arg11[%c0_22, %c0_23] : memref<2x32xf32, #tpu.memory_space<vmem>>, vector<2x32xf32>
    %cst_24 = arith.constant dense<0.000000e+00> : vector<2x2xf32>
    %60 = tpu.matmul %59, %58, %cst_24 {dimension_numbers = #tpu.dot_dimension_numbers<[1], [0], [0], [1], [0, 0, 1, 1], [], []>} : vector<2x32xf32>, vector<32x2xf32>, vector<2x2xf32> -> vector<2x2xf32>
    %cst_25 = arith.constant 0.000000e+00 : f32
    %61 = vector.broadcast %cst_25 : f32 to vector<2x2xf32>
    %62 = arith.maximumf %60, %61 : vector<2x2xf32>
    %c0_26 = arith.constant 0 : index
    %c0_27 = arith.constant 0 : index
    %63 = vector.load %arg12[%c0_26, %c0_27] : memref<32x2xf32, #tpu.memory_space<vmem>>, vector<32x2xf32>
    %cst_28 = arith.constant dense<0.000000e+00> : vector<32x2xf32>
    %64 = tpu.matmul %63, %62, %cst_28 {dimension_numbers = #tpu.dot_dimension_numbers<[1], [0], [0], [1], [0, 0, 1, 1], [], []>} : vector<32x2xf32>, vector<2x2xf32>, vector<32x2xf32> -> vector<32x2xf32>
    %cst_29 = arith.constant 0.000000e+00 : f32
    %65 = vector.broadcast %cst_29 : f32 to vector<32x2xf32>
    %66 = arith.subf %65, %64 : vector<32x2xf32>
    %67 = math.exp %66 : vector<32x2xf32>
    %cst_30 = arith.constant 1.000000e+00 : f32
    %68 = vector.broadcast %cst_30 : f32 to vector<32x2xf32>
    %69 = arith.addf %68, %67 : vector<32x2xf32>
    %70 = tpu.reciprocal %69 {approx = true} : vector<32x2xf32> -> vector<32x2xf32>
    %c0_31 = arith.constant 0 : index
    %c0_32 = arith.constant 0 : index
    %71 = vector.load %arg4[%c0_31, %c0_32] : memref<2x128xf32, #tpu.memory_space<vmem>>, vector<2x128xf32>
    %cst_33 = arith.constant dense<0.000000e+00> : vector<32x128xf32>
    %72 = tpu.matmul %70, %71, %cst_33 {dimension_numbers = #tpu.dot_dimension_numbers<[1], [0], [0], [1], [0, 0, 1, 1], [], []>} : vector<32x2xf32>, vector<2x128xf32>, vector<32x128xf32> -> vector<32x128xf32>
    %73 = arith.mulf %56, %72 : vector<32x128xf32>
    %74 = arith.addf %73, %0 : vector<32x128xf32>
    %cst_34 = arith.constant 0.000000e+00 : f32
    %75 = vector.broadcast %cst_34 : f32 to vector<32x128xf32>
    %76 = arith.maximumf %74, %75 : vector<32x128xf32>
    %c0_35 = arith.constant 0 : index
    %c0_36 = arith.constant 0 : index
    %77 = vector.load %arg13[%c0_35, %c0_36] : memref<32x128xf32, #tpu.memory_space<vmem>>, vector<32x128xf32>
    tpu.vector_store %arg13[%c0_35, %c0_36], %76 {strides = array<i32>} : memref<32x128xf32, #tpu.memory_space<vmem>>, vector<32x128xf32>,
    return
  }
  func.func @transform_0(%arg0: i32) -> (i32, i32) {
    %c0_i32 = arith.constant 0 : i32
    %c0_i32_0 = arith.constant 0 : i32
    %c0_i32_1 = arith.constant 0 : i32
    return %c0_i32, %c0_i32_0 : i32, i32
  }
  func.func @transform_1(%arg0: i32) -> (i32, i32) {
    %c0_i32 = arith.constant 0 : i32
    %c0_i32_0 = arith.constant 0 : i32
    %c0_i32_1 = arith.constant 0 : i32
    return %c0_i32, %c0_i32_0 : i32, i32
  }
  func.func @transform_2(%arg0: i32) -> (i32, i32) {
    %c0_i32 = arith.constant 0 : i32
    %c0_i32_0 = arith.constant 0 : i32
    %c0_i32_1 = arith.constant 0 : i32
    return %c0_i32, %c0_i32_0 : i32, i32
  }
  func.func @transform_3(%arg0: i32) -> (i32, i32) {
    %c0_i32 = arith.constant 0 : i32
    %c0_i32_0 = arith.constant 0 : i32
    %c0_i32_1 = arith.constant 0 : i32
    return %c0_i32, %c0_i32_0 : i32, i32
  }
  func.func @transform_4(%arg0: i32) -> (i32, i32) {
    %c0_i32 = arith.constant 0 : i32
    %c0_i32_0 = arith.constant 0 : i32
    %c0_i32_1 = arith.constant 0 : i32
    return %c0_i32, %c0_i32_0 : i32, i32
  }
  func.func @transform_5(%arg0: i32) -> (i32, i32) {
    %c0_i32 = arith.constant 0 : i32
    %c0_i32_0 = arith.constant 0 : i32
    %c0_i32_1 = arith.constant 0 : i32
    return %c0_i32, %c0_i32_0 : i32, i32
  }
  func.func @transform_6(%arg0: i32) -> (i32, i32) {
    %c0_i32 = arith.constant 0 : i32
    %c0_i32_0 = arith.constant 0 : i32
    %c0_i32_1 = arith.constant 0 : i32
    return %c0_i32, %c0_i32_0 : i32, i32
  }
  func.func @transform_7(%arg0: i32) -> (i32, i32) {
    %c0_i32 = arith.constant 0 : i32
    %c0_i32_0 = arith.constant 0 : i32
    %c0_i32_1 = arith.constant 0 : i32
    return %c0_i32, %c0_i32_0 : i32, i32
  }
  func.func @transform_8(%arg0: i32) -> (i32, i32) {
    %c0_i32 = arith.constant 0 : i32
    %c0_i32_0 = arith.constant 0 : i32
    %c0_i32_1 = arith.constant 0 : i32
    return %c0_i32, %c0_i32_0 : i32, i32
  }
  func.func @transform_9(%arg0: i32) -> (i32, i32) {
    %c0_i32 = arith.constant 0 : i32
    %c0_i32_0 = arith.constant 0 : i32
    %c0_i32_1 = arith.constant 0 : i32
    return %c0_i32, %c0_i32_0 : i32, i32
  }
  func.func @transform_10(%arg0: i32) -> (i32, i32) {
    %c0_i32 = arith.constant 0 : i32
    %c0_i32_0 = arith.constant 0 : i32
    %c0_i32_1 = arith.constant 0 : i32
    return %c0_i32, %c0_i32_0 : i32, i32
  }
  func.func @transform_11(%arg0: i32) -> (i32, i32) {
    %c0_i32 = arith.constant 0 : i32
    %c0_i32_0 = arith.constant 0 : i32
    %c0_i32_1 = arith.constant 0 : i32
    return %c0_i32, %c0_i32_0 : i32, i32
  }
  func.func @transform_12(%arg0: i32) -> (i32, i32) {
    %c0_i32 = arith.constant 0 : i32
    %c0_i32_0 = arith.constant 0 : i32
    %c0_i32_1 = arith.constant 0 : i32
    return %c0_i32, %c0_i32_0 : i32, i32
  }
}

</mosaic_0001>

<llo_original>
// kernel: tpu_custom_call.1
$region0: #{tpu_custom_call.1}
  #allocation0 [shape = 'u32[]', space=smem, size = 0x4, offset = 0x4, fixed_abs, tag = 'smem constant byte address 0x4 - core index']
  #allocation1 [shape = 'u32[144,128]{1,0:T(1,128)}', space=vmem, size = 0x12000, scoped, tag = 'internal scratch']
  %s0 = inlined_call_operand.vmem [shape: f32[32,128], index: 0, kind: input, shape index: {}]
  %s1 = inlined_call_operand.vmem [shape: f32[9,128], index: 1, kind: input, shape index: {}]
  %s2 = inlined_call_operand.vmem [shape: f32[128,2], index: 2, kind: input, shape index: {}]
  %s3 = inlined_call_operand.vmem [shape: f32[2,128], index: 3, kind: input, shape index: {}]
  %s4 = inlined_call_operand.vmem [shape: bf16[8,32], index: 4, kind: input, shape index: {}]
  %s5 = inlined_call_operand.vmem [shape: bf16[8,72], index: 5, kind: input, shape index: {}]
  %s6 = inlined_call_operand.vmem [shape: bf16[32,8], index: 6, kind: input, shape index: {}]
  %s7 = inlined_call_operand.vmem [shape: f32[8,1], index: 7, kind: input, shape index: {}]
  %s8 = inlined_call_operand.vmem [shape: f32[8,1], index: 8, kind: input, shape index: {}]
  %s9 = inlined_call_operand.vmem [shape: f32[32,1], index: 9, kind: input, shape index: {}]
  %s10 = inlined_call_operand.vmem [shape: f32[2,32], index: 10, kind: input, shape index: {}]
  %s11 = inlined_call_operand.vmem [shape: f32[32,2], index: 11, kind: input, shape index: {}]
  %s12 = inlined_call_operand.hbm [shape: f32[32,128], index: 12, kind: output, shape index: {}]
  %s13 = sld [smem:[#allocation0]]
  $region58: #{tpu_custom_call.1} parent=0
    _
  %s15 = ssub.s32 1, %s13
  %s16 = scalar_select 0, %s15, %s13
  $region1: #{tpu_custom_call.1} parent=0
    #allocation2 [shape = 'u8[16384]{0}', space=vmem, size = 0x4000, scoped, tag = 'output window, operand 0, single buffered']
    #allocation3 [shape = 's32[1]{0}', space=sflag, size = 0x4, scoped, tag = 'scoped memory for tpu_custom_call.1']
    %17 = vsyncpa [#allocation3], 0
    // Predicated region
    $region2: #{tpu_custom_call.1} parent=1 // pred_check
      _
    $region3: #{tpu_custom_call.1} parent=1 // pred_check_branch
      %19 = sbr.rel (0) target = $region5
    $region4: #{tpu_custom_call.1} parent=1 // pred_region
      _
    $region5: #{tpu_custom_call.1} parent=1 // pred_fallthru
      _
    // Predicated region
    $region6: #{tpu_custom_call.1} parent=1 // pred_check
      _
    $region7: #{tpu_custom_call.1} parent=1 // pred_check_branch
      %21 = sbr.rel (0) target = $region9
    $region8: #{tpu_custom_call.1} parent=1 // pred_region
      _
    $region9: #{tpu_custom_call.1} parent=1 // pred_fallthru
      _
    // Predicated region
    $region10: #{tpu_custom_call.1} parent=1 // pred_check
      _
    $region11: #{tpu_custom_call.1} parent=1 // pred_check_branch
      %23 = sbr.rel (0) target = $region13
    $region12: #{tpu_custom_call.1} parent=1 // pred_region
      _
    $region13: #{tpu_custom_call.1} parent=1 // pred_fallthru
      _
    // Predicated region
    $region14: #{tpu_custom_call.1} parent=1 // pred_check
      _
    $region15: #{tpu_custom_call.1} parent=1 // pred_check_branch
      %25 = sbr.rel (0) target = $region17
    $region16: #{tpu_custom_call.1} parent=1 // pred_region
      _
    $region17: #{tpu_custom_call.1} parent=1 // pred_fallthru
      _
    // Predicated region
    $region18: #{tpu_custom_call.1} parent=1 // pred_check
      _
    $region19: #{tpu_custom_call.1} parent=1 // pred_check_branch
      %27 = sbr.rel (0) target = $region21
    $region20: #{tpu_custom_call.1} parent=1 // pred_region
      _
    $region21: #{tpu_custom_call.1} parent=1 // pred_fallthru
      _
    // Predicated region
    $region22: #{tpu_custom_call.1} parent=1 // pred_check
      _
    $region23: #{tpu_custom_call.1} parent=1 // pred_check_branch
      %29 = sbr.rel (0) target = $region25
    $region24: #{tpu_custom_call.1} parent=1 // pred_region
      _
    $region25: #{tpu_custom_call.1} parent=1 // pred_fallthru
      _
    // Predicated region
    $region26: #{tpu_custom_call.1} parent=1 // pred_check
      _
    $region27: #{tpu_custom_call.1} parent=1 // pred_check_branch
      %31 = sbr.rel (0) target = $region29
    $region28: #{tpu_custom_call.1} parent=1 // pred_region
      _
    $region29: #{tpu_custom_call.1} parent=1 // pred_fallthru
      _
    // Predicated region
    $region30: #{tpu_custom_call.1} parent=1 // pred_check
      _
    $region31: #{tpu_custom_call.1} parent=1 // pred_check_branch
      %33 = sbr.rel (0) target = $region33
    $region32: #{tpu_custom_call.1} parent=1 // pred_region
      _
    $region33: #{tpu_custom_call.1} parent=1 // pred_fallthru
      _
    // Predicated region
    $region34: #{tpu_custom_call.1} parent=1 // pred_check
      _
    $region35: #{tpu_custom_call.1} parent=1 // pred_check_branch
      %35 = sbr.rel (0) target = $region37
    $region36: #{tpu_custom_call.1} parent=1 // pred_region
      _
    $region37: #{tpu_custom_call.1} parent=1 // pred_fallthru
      _
    // Predicated region
    $region38: #{tpu_custom_call.1} parent=1 // pred_check
      _
    $region39: #{tpu_custom_call.1} parent=1 // pred_check_branch
      %37 = sbr.rel (0) target = $region41
    $region40: #{tpu_custom_call.1} parent=1 // pred_region
      _
    $region41: #{tpu_custom_call.1} parent=1 // pred_fallthru
      _
    // Predicated region
    $region42: #{tpu_custom_call.1} parent=1 // pred_check
      _
    $region43: #{tpu_custom_call.1} parent=1 // pred_check_branch
      %39 = sbr.rel (0) target = $region45
    $region44: #{tpu_custom_call.1} parent=1 // pred_region
      _
    $region45: #{tpu_custom_call.1} parent=1 // pred_fallthru
      _
    // Predicated region
    $region46: #{tpu_custom_call.1} parent=1 // pred_check
      _
    $region47: #{tpu_custom_call.1} parent=1 // pred_check_branch
      %41 = sbr.rel (0) target = $region49
    $region48: #{tpu_custom_call.1} parent=1 // pred_region
      _
    $region49: #{tpu_custom_call.1} parent=1 // pred_fallthru
      _
    %v43 = vld [vmem:[%s0] sm:$0xff]
    %v44 = vld [vmem:[%s0 + $0x8] sm:$0xff]
    %v45 = vld [vmem:[%s0 + $0x10] sm:$0xff]
    %v46 = vld [vmem:[%s0 + $0x18] sm:$0xff]
    %v47 = vld [vmem:[%s4] sm:$0xf]
    %v48 = vpack.c.bf16 %v44, %v43
    %v49 = vpack.c.bf16 %v46, %v45
    %v50 = vld [vmem:[%s7] sm:$0xff]
    %52 = vset.pattern.permute.xlu0 0
    %53 = vperm.xlu0 %52, %v50
    %v54 = vpop.permute.xlu0 %53
    %vm56 = vcmask 261120
    %v58 = vsel %vm56, %v47, 0
    %60 = vmatprep.subr.bf16.mxu0 0
    %61 = vmatpush1.bf16.msra.mxu0 0
    %62 = vmatprep.subr.bf16.mxu0 0
    %63 = vmatpush1.bf16.msra.mxu0 0
    %64 = vmatprep.subr.bf16.mxu0 0
    %65 = vmatpush1.bf16.msra.mxu0 0
    %66 = vmatprep.subr.bf16.mxu0 0
    %67 = vmatpush1.bf16.msra.mxu0 0
    %68 = vmatprep.subr.bf16.mxu0 0
    %69 = vmatpush1.bf16.msra.mxu0 0
    %70 = vmatprep.subr.bf16.mxu0 0
    %71 = vmatpush1.bf16.msra.mxu0 0
    %72 = vmatprep.subr.bf16.mxu0 0
    %73 = vmatpush1.bf16.msra.mxu0 %v49
    %74 = vmatprep.subr.bf16.mxu0 0
    %75 = vmatpush1.bf16.msra.mxu0 %v48
    %76 = vmatprep.subr.bf16.mxu0 0
    %77 = vmatpush2.bf16.msra.mxu0 0
    %78 = vmatprep.subr.bf16.mxu0 0
    %79 = vmatpush2.bf16.msra.mxu0 0
    %80 = vmatprep.subr.bf16.mxu0 0
    %81 = vmatpush2.bf16.msra.mxu0 0
    %82 = vmatprep.subr.bf16.mxu0 0
    %83 = vmatpush2.bf16.msra.mxu0 0
    %84 = vmatprep.subr.bf16.mxu0 0
    %85 = vmatpush2.bf16.msra.mxu0 0
    %86 = vmatprep.subr.bf16.mxu0 0
    %87 = vmatpush2.bf16.msra.mxu0 0
    %88 = vmatprep.subr.bf16.mxu0 0
    %89 = vmatpush2.bf16.msra.mxu0 0
    %90 = vmatprep.subr.bf16.mxu0 0
    %91 = vmatpush2.bf16.msra.mxu0 0
    %92 = vmatprep.mubr.bf16.mxu0 0
    %93 = vmatmul.mubr.bf16.gmra.mxu0 %v58
    %v94 = vpop.f32.mrf.mxu0
    %v95 = vadd.f32 %v54, %v94
    %v96 = vpop.f32.mrf.mxu0
    %v97 = vpop.f32.mrf.mxu0
    %v98 = vpop.f32.mrf.mxu0
    %99 = vdwg.mxu0
    %v100 = vmax.f32 %v95, 0.0
    %v101 = vld [vmem:[%s1] sm:$0xff]
    %v102 = vld [vmem:[%s1 + $0x8] sm:$0x1]
    %103 = vrot.lane.b32.xlu0 %v100, 9
    %v104 = vpop.permute.xlu0 %103
    %v105 = vlaneseq
    %v106 = vshrl.u32 %v105, 7
    %v107 = vsub.s32 0, %v106
    %v108 = vrot.slane %v101, %v107
    %v109 = vmul.f32 %v104, %v108
    %110 = vrot.lane.b32.xlu0 %v100, 8
    %v111 = vpop.permute.xlu0 %110
    %v112 = vlaneseq
    %v113 = vshrl.u32 %v112, 7
    %v114 = vsub.s32 1, %v113
    %v115 = vrot.slane %v101, %v114
    %v116 = vmul.f32 %v111, %v115
    %117 = vrot.lane.b32.xlu0 %v100, 7
    %v118 = vpop.permute.xlu0 %117
    %v119 = vlaneseq
    %v120 = vshrl.u32 %v119, 7
    %v121 = vsub.s32 2, %v120
    %v122 = vrot.slane %v101, %v121
    %v123 = vmul.f32 %v118, %v122
    %124 = vrot.lane.b32.xlu0 %v100, 1
    %v125 = vpop.permute.xlu0 %124
    %v126 = vlaneseq
    %v127 = vshrl.u32 %v126, 7
    %v128 = vsub.s32 3, %v127
    %v129 = vrot.slane %v101, %v128
    %v130 = vmul.f32 %v125, %v129
    %131 = vrot.lane.b32.xlu0 %v100, 127
    %v132 = vpop.permute.xlu0 %131
    %v133 = vlaneseq
    %v134 = vshrl.u32 %v133, 7
    %v135 = vsub.s32 5, %v134
    %v136 = vrot.slane %v101, %v135
    %v137 = vmul.f32 %v132, %v136
    %138 = vrot.lane.b32.xlu0 %v100, 121
    %v139 = vpop.permute.xlu0 %138
    %v140 = vlaneseq
    %v141 = vshrl.u32 %v140, 7
    %v142 = vsub.s32 6, %v141
    %v143 = vrot.slane %v101, %v142
    %v144 = vmul.f32 %v139, %v143
    %145 = vrot.lane.b32.xlu0 %v100, 120
    %v146 = vpop.permute.xlu0 %145
    %v147 = vlaneseq
    %v148 = vshrl.u32 %v147, 7
    %v149 = vsub.s32 7, %v148
    %v150 = vrot.slane %v101, %v149
    %v151 = vmul.f32 %v146, %v150
    %152 = vrot.lane.b32.xlu0 %v100, 119
    %v153 = vpop.permute.xlu0 %152
    %v154 = vlaneseq
    %v155 = vshrl.u32 %v154, 7
    %v156 = vsub.s32 0, %v155
    %v157 = vrot.slane %v102, %v156
    %v158 = vmul.f32 %v153, %v157
    %v159 = vpack.c.bf16 %v116, %v109
    %v160 = vpack.c.bf16 %v130, %v123
    %v161 = vpack.c.bf16 %v137, %v100
    %v162 = vpack.c.bf16 %v151, %v144
    %v163 = vpack.c.bf16 %v158, %v158
    %v164 = vld [vmem:[%s5] sm:$0xf]
    %v165 = vld [vmem:[%s8] sm:$0xff]
    %167 = vset.pattern.permute.xlu0 0
    %168 = vperm.xlu0 %167, %v165
    %v169 = vpop.permute.xlu0 %168
    %vm171 = vcmask 588800
    %v173 = vsel %vm171, %v164, 0
    %vm175 = vcmask 1043456
    %v177 = vsel %vm175, %v163, 0
    %179 = vmatprep.subr.bf16.mxu0 0
    %180 = vmatpush1.bf16.msra.mxu0 0
    %181 = vmatprep.subr.bf16.mxu0 0
    %182 = vmatpush1.bf16.msra.mxu0 0
    %183 = vmatprep.subr.bf16.mxu0 0
    %184 = vmatpush1.bf16.msra.mxu0 0
    %185 = vmatprep.subr.bf16.mxu0 0
    %186 = vmatpush1.bf16.msra.mxu0 %v177
    %187 = vmatprep.subr.bf16.mxu0 0
    %188 = vmatpush1.bf16.msra.mxu0 %v162
    %189 = vmatprep.subr.bf16.mxu0 0
    %190 = vmatpush1.bf16.msra.mxu0 %v161
    %191 = vmatprep.subr.bf16.mxu0 0
    %192 = vmatpush1.bf16.msra.mxu0 %v160
    %193 = vmatprep.subr.bf16.mxu0 0
    %194 = vmatpush1.bf16.msra.mxu0 %v159
    %195 = vmatprep.subr.bf16.mxu0 0
    %196 = vmatpush2.bf16.msra.mxu0 0
    %197 = vmatprep.subr.bf16.mxu0 0
    %198 = vmatpush2.bf16.msra.mxu0 0
    %199 = vmatprep.subr.bf16.mxu0 0
    %200 = vmatpush2.bf16.msra.mxu0 0
    %201 = vmatprep.subr.bf16.mxu0 0
    %202 = vmatpush2.bf16.msra.mxu0 0
    %203 = vmatprep.subr.bf16.mxu0 0
    %204 = vmatpush2.bf16.msra.mxu0 0
    %205 = vmatprep.subr.bf16.mxu0 0
    %206 = vmatpush2.bf16.msra.mxu0 0
    %207 = vmatprep.subr.bf16.mxu0 0
    %208 = vmatpush2.bf16.msra.mxu0 0
    %209 = vmatprep.subr.bf16.mxu0 0
    %210 = vmatpush2.bf16.msra.mxu0 0
    %211 = vmatprep.mubr.bf16.mxu0 0
    %212 = vmatmul.mubr.bf16.gmra.mxu0 %v173
    %v213 = vpop.f32.mrf.mxu0
    %v214 = vadd.f32 %v169, %v213
    %v215 = vpop.f32.mrf.mxu0
    %v216 = vpop.f32.mrf.mxu0
    %v217 = vpop.f32.mrf.mxu0
    %218 = vdwg.mxu0
    %v219 = vmax.f32 %v214, 0.0
    %v220 = vld [vmem:[%s6] sm:$0xf]
    %v221 = vld [vmem:[%s6 + $0x4] sm:$0xf]
    %v222 = vld [vmem:[%s6 + $0x8] sm:$0xf]
    %v223 = vld [vmem:[%s6 + $0xc] sm:$0xf]
    %v224 = vpack.c.bf16 %v219, %v219
    %v225 = vld [vmem:[%s9] sm:$0xff]
    %v226 = vld [vmem:[%s9 + $0x8] sm:$0xff]
    %v227 = vld [vmem:[%s9 + $0x10] sm:$0xff]
    %v228 = vld [vmem:[%s9 + $0x18] sm:$0xff]
    %230 = vset.pattern.permute.xlu0 0
    %231 = vperm.xlu0 %230, %v225
    %v232 = vpop.permute.xlu0 %231
    %235 = vset.pattern.permute.xlu0 0
    %236 = vperm.xlu0 %235, %v226
    %v237 = vpop.permute.xlu0 %236
    %240 = vset.pattern.permute.xlu0 0
    %241 = vperm.xlu0 %240, %v227
    %v242 = vpop.permute.xlu0 %241
    %245 = vset.pattern.permute.xlu0 0
    %246 = vperm.xlu0 %245, %v228
    %v247 = vpop.permute.xlu0 %246
    %v253 = vunpack.c.l.b16 %v220
    %v254 = vunpack.c.l.b16 %v221
    %v255 = vunpack.c.l.b16 %v222
    %v256 = vunpack.c.l.b16 %v223
    %v257 = vpack.c.b16 %v254, %v253
    %v258 = vpack.c.b16 %v256, %v255
    %vm259 = vcmask 64512
    %v261 = vsel %vm259, %v257, 0
    %v264 = vsel %vm259, %v258, 0
    %v267 = vsel %vm175, %v224, 0
    %269 = vmatprep.subr.bf16.mxu0 0
    %270 = vmatpush1.bf16.msra.mxu0 0
    %271 = vmatprep.subr.bf16.mxu0 0
    %272 = vmatpush1.bf16.msra.mxu0 0
    %273 = vmatprep.subr.bf16.mxu0 0
    %274 = vmatpush1.bf16.msra.mxu0 0
    %275 = vmatprep.subr.bf16.mxu0 0
    %276 = vmatpush1.bf16.msra.mxu0 0
    %277 = vmatprep.subr.bf16.mxu0 0
    %278 = vmatpush1.bf16.msra.mxu0 0
    %279 = vmatprep.subr.bf16.mxu0 0
    %280 = vmatpush1.bf16.msra.mxu0 0
    %281 = vmatprep.subr.bf16.mxu0 0
    %282 = vmatpush1.bf16.msra.mxu0 0
    %283 = vmatprep.subr.bf16.mxu0 0
    %284 = vmatpush1.bf16.msra.mxu0 %v267
    %285 = vmatprep.subr.bf16.mxu0 0
    %286 = vmatpush2.bf16.msra.mxu0 0
    %287 = vmatprep.subr.bf16.mxu0 0
    %288 = vmatpush2.bf16.msra.mxu0 0
    %289 = vmatprep.subr.bf16.mxu0 0
    %290 = vmatpush2.bf16.msra.mxu0 0
    %291 = vmatprep.subr.bf16.mxu0 0
    %292 = vmatpush2.bf16.msra.mxu0 0
    %293 = vmatprep.subr.bf16.mxu0 0
    %294 = vmatpush2.bf16.msra.mxu0 0
    %295 = vmatprep.subr.bf16.mxu0 0
    %296 = vmatpush2.bf16.msra.mxu0 0
    %297 = vmatprep.subr.bf16.mxu0 0
    %298 = vmatpush2.bf16.msra.mxu0 0
    %299 = vmatprep.subr.bf16.mxu0 0
    %300 = vmatpush2.bf16.msra.mxu0 0
    %301 = vmatprep.mubr.bf16.mxu0 0
    %302 = vmatmul.mubr.bf16.gmra.mxu0 %v261
    %v303 = vpop.f32.mrf.mxu0
    %v304 = vadd.f32 %v232, %v303
    %v305 = vpop.f32.mrf.mxu0
    %v306 = vpop.f32.mrf.mxu0
    %v307 = vadd.f32 %v237, %v306
    %v308 = vpop.f32.mrf.mxu0
    %309 = vmatprep.mubr.bf16.mxu0 0
    %310 = vmatmul.mubr.bf16.gmra.mxu0 %v264
    %v311 = vpop.f32.mrf.mxu0
    %v312 = vadd.f32 %v242, %v311
    %v313 = vpop.f32.mrf.mxu0
    %v314 = vpop.f32.mrf.mxu0
    %v315 = vadd.f32 %v247, %v314
    %v316 = vpop.f32.mrf.mxu0
    %317 = vdwg.mxu0
    %v318 = vld [vmem:[%s2] sm:$0xff]
    %v319 = vld [vmem:[%s2 + $0x8] sm:$0xff]
    %v320 = vld [vmem:[%s2 + $0x10] sm:$0xff]
    %v321 = vld [vmem:[%s2 + $0x18] sm:$0xff]
    %v322 = vld [vmem:[%s2 + $0x20] sm:$0xff]
    %v323 = vld [vmem:[%s2 + $0x28] sm:$0xff]
    %v324 = vld [vmem:[%s2 + $0x30] sm:$0xff]
    %v325 = vld [vmem:[%s2 + $0x38] sm:$0xff]
    %v326 = vld [vmem:[%s2 + $0x40] sm:$0xff]
    %v327 = vld [vmem:[%s2 + $0x48] sm:$0xff]
    %v328 = vld [vmem:[%s2 + $0x50] sm:$0xff]
    %v329 = vld [vmem:[%s2 + $0x58] sm:$0xff]
    %v330 = vld [vmem:[%s2 + $0x60] sm:$0xff]
    %v331 = vld [vmem:[%s2 + $0x68] sm:$0xff]
    %v332 = vld [vmem:[%s2 + $0x70] sm:$0xff]
    %v333 = vld [vmem:[%s2 + $0x78] sm:$0xff]
    %334 = vmatprep.subr.mxu0 0.0
    %335 = vmatpush1.msra.mxu0 %v333
    %336 = vmatprep.subr.mxu0 0.0
    %337 = vmatpush1.msra.mxu0 %v332
    %338 = vmatprep.subr.mxu0 0.0
    %339 = vmatpush1.msra.mxu0 %v331
    %340 = vmatprep.subr.mxu0 0.0
    %341 = vmatpush1.msra.mxu0 %v330
    %342 = vmatprep.subr.mxu0 0.0
    %343 = vmatpush1.msra.mxu0 %v329
    %344 = vmatprep.subr.mxu0 0.0
    %345 = vmatpush1.msra.mxu0 %v328
    %346 = vmatprep.subr.mxu0 0.0
    %347 = vmatpush1.msra.mxu0 %v327
    %348 = vmatprep.subr.mxu0 0.0
    %349 = vmatpush1.msra.mxu0 %v326
    %350 = vmatprep.subr.mxu0 0.0
    %351 = vmatpush1.msra.mxu0 %v325
    %352 = vmatprep.subr.mxu0 0.0
    %353 = vmatpush1.msra.mxu0 %v324
    %354 = vmatprep.subr.mxu0 0.0
    %355 = vmatpush1.msra.mxu0 %v323
    %356 = vmatprep.subr.mxu0 0.0
    %357 = vmatpush1.msra.mxu0 %v322
    %358 = vmatprep.subr.mxu0 0.0
    %359 = vmatpush1.msra.mxu0 %v321
    %360 = vmatprep.subr.mxu0 0.0
    %361 = vmatpush1.msra.mxu0 %v320
    %362 = vmatprep.subr.mxu0 0.0
    %363 = vmatpush1.msra.mxu0 %v319
    %364 = vmatprep.subr.mxu0 0.0
    %365 = vmatpush1.msra.mxu0 %v318
    %366 = vmatprep.subr.mxu0 0.0
    %367 = vmatpush2.msra.mxu0 0.0
    %368 = vmatprep.subr.mxu0 0.0
    %369 = vmatpush2.msra.mxu0 0.0
    %370 = vmatprep.subr.mxu0 0.0
    %371 = vmatpush2.msra.mxu0 0.0
    %372 = vmatprep.subr.mxu0 0.0
    %373 = vmatpush2.msra.mxu0 0.0
    %374 = vmatprep.subr.mxu0 0.0
    %375 = vmatpush2.msra.mxu0 0.0
    %376 = vmatprep.subr.mxu0 0.0
    %377 = vmatpush2.msra.mxu0 0.0
    %378 = vmatprep.subr.mxu0 0.0
    %379 = vmatpush2.msra.mxu0 0.0
    %380 = vmatprep.subr.mxu0 0.0
    %381 = vmatpush2.msra.mxu0 0.0
    %382 = vmatprep.subr.mxu0 0.0
    %383 = vmatpush2.msra.mxu0 0.0
    %384 = vmatprep.subr.mxu0 0.0
    %385 = vmatpush2.msra.mxu0 0.0
    %386 = vmatprep.subr.mxu0 0.0
    %387 = vmatpush2.msra.mxu0 0.0
    %388 = vmatprep.subr.mxu0 0.0
    %389 = vmatpush2.msra.mxu0 0.0
    %390 = vmatprep.subr.mxu0 0.0
    %391 = vmatpush2.msra.mxu0 0.0
    %392 = vmatprep.subr.mxu0 0.0
    %393 = vmatpush2.msra.mxu0 0.0
    %394 = vmatprep.subr.mxu0 0.0
    %395 = vmatpush2.msra.mxu0 0.0
    %396 = vmatprep.subr.mxu0 0.0
    %397 = vmatpush2.msra.mxu0 0.0
    %398 = vmatprep.mubr.f32.mxu0 0.0
    %399 = vmatmul.mubr.f32.gmra.mxu0 %v304
    %v400 = vpop.f32.mrf.mxu0
    %v401 = vadd.f32 0.0, %v400
    %v402 = vpop.f32.mrf.mxu0
    %403 = vmatprep.mubr.f32.mxu0 0.0
    %404 = vmatmul.mubr.f32.gmra.mxu0 %v307
    %v405 = vpop.f32.mrf.mxu0
    %v406 = vadd.f32 0.0, %v405
    %v407 = vpop.f32.mrf.mxu0
    %408 = vmatprep.mubr.f32.mxu0 0.0
    %409 = vmatmul.mubr.f32.gmra.mxu0 %v312
    %v410 = vpop.f32.mrf.mxu0
    %v411 = vadd.f32 0.0, %v410
    %v412 = vpop.f32.mrf.mxu0
    %413 = vmatprep.mubr.f32.mxu0 0.0
    %414 = vmatmul.mubr.f32.gmra.mxu0 %v315
    %v415 = vpop.f32.mrf.mxu0
    %v416 = vadd.f32 0.0, %v415
    %v417 = vpop.f32.mrf.mxu0
    %418 = vdwg.mxu0
    %v419 = vld [vmem:[%s10] sm:$0x3]
    %v421 = vsel %vm56, %v419, 0
    %423 = vmatprep.subr.mxu0 0.0
    %424 = vmatpush1.msra.mxu0 0.0
    %425 = vmatprep.subr.mxu0 0.0
    %426 = vmatpush1.msra.mxu0 0.0
    %427 = vmatprep.subr.mxu0 0.0
    %428 = vmatpush1.msra.mxu0 0.0
    %429 = vmatprep.subr.mxu0 0.0
    %430 = vmatpush1.msra.mxu0 0.0
    %431 = vmatprep.subr.mxu0 0.0
    %432 = vmatpush1.msra.mxu0 0.0
    %433 = vmatprep.subr.mxu0 0.0
    %434 = vmatpush1.msra.mxu0 0.0
    %435 = vmatprep.subr.mxu0 0.0
    %436 = vmatpush1.msra.mxu0 0.0
    %437 = vmatprep.subr.mxu0 0.0
    %438 = vmatpush1.msra.mxu0 0.0
    %439 = vmatprep.subr.mxu0 0.0
    %440 = vmatpush1.msra.mxu0 0.0
    %441 = vmatprep.subr.mxu0 0.0
    %442 = vmatpush1.msra.mxu0 0.0
    %443 = vmatprep.subr.mxu0 0.0
    %444 = vmatpush1.msra.mxu0 0.0
    %445 = vmatprep.subr.mxu0 0.0
    %446 = vmatpush1.msra.mxu0 0.0
    %447 = vmatprep.subr.mxu0 0.0
    %448 = vmatpush1.msra.mxu0 %v416
    %449 = vmatprep.subr.mxu0 0.0
    %450 = vmatpush1.msra.mxu0 %v411
    %451 = vmatprep.subr.mxu0 0.0
    %452 = vmatpush1.msra.mxu0 %v406
    %453 = vmatprep.subr.mxu0 0.0
    %454 = vmatpush1.msra.mxu0 %v401
    %455 = vmatprep.subr.mxu0 0.0
    %456 = vmatpush2.msra.mxu0 0.0
    %457 = vmatprep.subr.mxu0 0.0
    %458 = vmatpush2.msra.mxu0 0.0
    %459 = vmatprep.subr.mxu0 0.0
    %460 = vmatpush2.msra.mxu0 0.0
    %461 = vmatprep.subr.mxu0 0.0
    %462 = vmatpush2.msra.mxu0 0.0
    %463 = vmatprep.subr.mxu0 0.0
    %464 = vmatpush2.msra.mxu0 0.0
    %465 = vmatprep.subr.mxu0 0.0
    %466 = vmatpush2.msra.mxu0 0.0
    %467 = vmatprep.subr.mxu0 0.0
    %468 = vmatpush2.msra.mxu0 0.0
    %469 = vmatprep.subr.mxu0 0.0
    %470 = vmatpush2.msra.mxu0 0.0
    %471 = vmatprep.subr.mxu0 0.0
    %472 = vmatpush2.msra.mxu0 0.0
    %473 = vmatprep.subr.mxu0 0.0
    %474 = vmatpush2.msra.mxu0 0.0
    %475 = vmatprep.subr.mxu0 0.0
    %476 = vmatpush2.msra.mxu0 0.0
    %477 = vmatprep.subr.mxu0 0.0
    %478 = vmatpush2.msra.mxu0 0.0
    %479 = vmatprep.subr.mxu0 0.0
    %480 = vmatpush2.msra.mxu0 0.0
    %481 = vmatprep.subr.mxu0 0.0
    %482 = vmatpush2.msra.mxu0 0.0
    %483 = vmatprep.subr.mxu0 0.0
    %484 = vmatpush2.msra.mxu0 0.0
    %485 = vmatprep.subr.mxu0 0.0
    %486 = vmatpush2.msra.mxu0 0.0
    %487 = vmatprep.mubr.f32.mxu0 0.0
    %488 = vmatmul.mubr.f32.gmra.mxu0 %v421
    %v489 = vpop.f32.mrf.mxu0
    %v490 = vadd.f32 0.0, %v489
    %v491 = vpop.f32.mrf.mxu0
    %492 = vdwg.mxu0
    %v493 = vmax.f32 %v490, 0.0
    %v494 = vld [vmem:[%s11] sm:$0xff]
    %v495 = vld [vmem:[%s11 + $0x8] sm:$0xff]
    %v496 = vld [vmem:[%s11 + $0x10] sm:$0xff]
    %v497 = vld [vmem:[%s11 + $0x18] sm:$0xff]
    %vm498 = vcmask 15360
    %v500 = vsel %vm498, %v494, 0
    %v503 = vsel %vm498, %v495, 0
    %v506 = vsel %vm498, %v496, 0
    %v509 = vsel %vm498, %v497, 0
    %vm511 = vcmask 1041408
    %v513 = vsel %vm511, %v493, 0
    %515 = vmatprep.subr.mxu0 0.0
    %516 = vmatpush1.msra.mxu0 0.0
    %517 = vmatprep.subr.mxu0 0.0
    %518 = vmatpush1.msra.mxu0 0.0
    %519 = vmatprep.subr.mxu0 0.0
    %520 = vmatpush1.msra.mxu0 0.0
    %521 = vmatprep.subr.mxu0 0.0
    %522 = vmatpush1.msra.mxu0 0.0
    %523 = vmatprep.subr.mxu0 0.0
    %524 = vmatpush1.msra.mxu0 0.0
    %525 = vmatprep.subr.mxu0 0.0
    %526 = vmatpush1.msra.mxu0 0.0
    %527 = vmatprep.subr.mxu0 0.0
    %528 = vmatpush1.msra.mxu0 0.0
    %529 = vmatprep.subr.mxu0 0.0
    %530 = vmatpush1.msra.mxu0 0.0
    %531 = vmatprep.subr.mxu0 0.0
    %532 = vmatpush1.msra.mxu0 0.0
    %533 = vmatprep.subr.mxu0 0.0
    %534 = vmatpush1.msra.mxu0 0.0
    %535 = vmatprep.subr.mxu0 0.0
    %536 = vmatpush1.msra.mxu0 0.0
    %537 = vmatprep.subr.mxu0 0.0
    %538 = vmatpush1.msra.mxu0 0.0
    %539 = vmatprep.subr.mxu0 0.0
    %540 = vmatpush1.msra.mxu0 0.0
    %541 = vmatprep.subr.mxu0 0.0
    %542 = vmatpush1.msra.mxu0 0.0
    %543 = vmatprep.subr.mxu0 0.0
    %544 = vmatpush1.msra.mxu0 0.0
    %545 = vmatprep.subr.mxu0 0.0
    %546 = vmatpush1.msra.mxu0 %v513
    %547 = vmatprep.subr.mxu0 0.0
    %548 = vmatpush2.msra.mxu0 0.0
    %549 = vmatprep.subr.mxu0 0.0
    %550 = vmatpush2.msra.mxu0 0.0
    %551 = vmatprep.subr.mxu0 0.0
    %552 = vmatpush2.msra.mxu0 0.0
    %553 = vmatprep.subr.mxu0 0.0
    %554 = vmatpush2.msra.mxu0 0.0
    %555 = vmatprep.subr.mxu0 0.0
    %556 = vmatpush2.msra.mxu0 0.0
    %557 = vmatprep.subr.mxu0 0.0
    %558 = vmatpush2.msra.mxu0 0.0
    %559 = vmatprep.subr.mxu0 0.0
    %560 = vmatpush2.msra.mxu0 0.0
    %561 = vmatprep.subr.mxu0 0.0
    %562 = vmatpush2.msra.mxu0 0.0
    %563 = vmatprep.subr.mxu0 0.0
    %564 = vmatpush2.msra.mxu0 0.0
    %565 = vmatprep.subr.mxu0 0.0
    %566 = vmatpush2.msra.mxu0 0.0
    %567 = vmatprep.subr.mxu0 0.0
    %568 = vmatpush2.msra.mxu0 0.0
    %569 = vmatprep.subr.mxu0 0.0
    %570 = vmatpush2.msra.mxu0 0.0
    %571 = vmatprep.subr.mxu0 0.0
    %572 = vmatpush2.msra.mxu0 0.0
    %573 = vmatprep.subr.mxu0 0.0
    %574 = vmatpush2.msra.mxu0 0.0
    %575 = vmatprep.subr.mxu0 0.0
    %576 = vmatpush2.msra.mxu0 0.0
    %577 = vmatprep.subr.mxu0 0.0
    %578 = vmatpush2.msra.mxu0 0.0
    %579 = vmatprep.mubr.f32.mxu0 0.0
    %580 = vmatmul.mubr.f32.gmra.mxu0 %v500
    %v581 = vpop.f32.mrf.mxu0
    %v582 = vadd.f32 0.0, %v581
    %v583 = vpop.f32.mrf.mxu0
    %584 = vmatprep.mubr.f32.mxu0 0.0
    %585 = vmatmul.mubr.f32.gmra.mxu0 %v503
    %v586 = vpop.f32.mrf.mxu0
    %v587 = vadd.f32 0.0, %v586
    %v588 = vpop.f32.mrf.mxu0
    %589 = vmatprep.mubr.f32.mxu0 0.0
    %590 = vmatmul.mubr.f32.gmra.mxu0 %v506
    %v591 = vpop.f32.mrf.mxu0
    %v592 = vadd.f32 0.0, %v591
    %v593 = vpop.f32.mrf.mxu0
    %594 = vmatprep.mubr.f32.mxu0 0.0
    %595 = vmatmul.mubr.f32.gmra.mxu0 %v509
    %v596 = vpop.f32.mrf.mxu0
    %v597 = vadd.f32 0.0, %v596
    %v598 = vpop.f32.mrf.mxu0
    %599 = vdwg.mxu0
    %v600 = vsub.f32 0.0, %v582
    %v601 = vsub.f32 0.0, %v587
    %v602 = vsub.f32 0.0, %v592
    %v603 = vsub.f32 0.0, %v597
    %v604 = vmul.f32 %v600, 1.442695
    %v605 = vpow.pop %v604
    %v606 = vmul.f32 %v601, 1.442695
    %v607 = vpow.pop %v606
    %v608 = vmul.f32 %v602, 1.442695
    %v609 = vpow.pop %v608
    %v610 = vmul.f32 %v603, 1.442695
    %v611 = vpow.pop %v610
    %v612 = vadd.f32 %v605, 1.0
    %v613 = vadd.f32 %v607, 1.0
    %v614 = vadd.f32 %v609, 1.0
    %v615 = vadd.f32 %v611, 1.0
    %v616 = vrcp.pop %v612
    %v617 = vrcp.pop %v613
    %v618 = vrcp.pop %v614
    %v619 = vrcp.pop %v615
    %v620 = vld [vmem:[%s3] sm:$0x3]
    %v622 = vsel %vm498, %v616, 0
    %v625 = vsel %vm498, %v617, 0
    %v628 = vsel %vm498, %v618, 0
    %v631 = vsel %vm498, %v619, 0
    %v634 = vsel %vm511, %v620, 0
    %636 = vmatprep.subr.mxu0 0.0
    %637 = vmatpush1.msra.mxu0 0.0
    %638 = vmatprep.subr.mxu0 0.0
    %639 = vmatpush1.msra.mxu0 0.0
    %640 = vmatprep.subr.mxu0 0.0
    %641 = vmatpush1.msra.mxu0 0.0
    %642 = vmatprep.subr.mxu0 0.0
    %643 = vmatpush1.msra.mxu0 0.0
    %644 = vmatprep.subr.mxu0 0.0
    %645 = vmatpush1.msra.mxu0 0.0
    %646 = vmatprep.subr.mxu0 0.0
    %647 = vmatpush1.msra.mxu0 0.0
    %648 = vmatprep.subr.mxu0 0.0
    %649 = vmatpush1.msra.mxu0 0.0
    %650 = vmatprep.subr.mxu0 0.0
    %651 = vmatpush1.msra.mxu0 0.0
    %652 = vmatprep.subr.mxu0 0.0
    %653 = vmatpush1.msra.mxu0 0.0
    %654 = vmatprep.subr.mxu0 0.0
    %655 = vmatpush1.msra.mxu0 0.0
    %656 = vmatprep.subr.mxu0 0.0
    %657 = vmatpush1.msra.mxu0 0.0
    %658 = vmatprep.subr.mxu0 0.0
    %659 = vmatpush1.msra.mxu0 0.0
    %660 = vmatprep.subr.mxu0 0.0
    %661 = vmatpush1.msra.mxu0 0.0
    %662 = vmatprep.subr.mxu0 0.0
    %663 = vmatpush1.msra.mxu0 0.0
    %664 = vmatprep.subr.mxu0 0.0
    %665 = vmatpush1.msra.mxu0 0.0
    %666 = vmatprep.subr.mxu0 0.0
    %667 = vmatpush1.msra.mxu0 %v634
    %668 = vmatprep.subr.mxu0 0.0
    %669 = vmatpush2.msra.mxu0 0.0
    %670 = vmatprep.subr.mxu0 0.0
    %671 = vmatpush2.msra.mxu0 0.0
    %672 = vmatprep.subr.mxu0 0.0
    %673 = vmatpush2.msra.mxu0 0.0
    %674 = vmatprep.subr.mxu0 0.0
    %675 = vmatpush2.msra.mxu0 0.0
    %676 = vmatprep.subr.mxu0 0.0
    %677 = vmatpush2.msra.mxu0 0.0
    %678 = vmatprep.subr.mxu0 0.0
    %679 = vmatpush2.msra.mxu0 0.0
    %680 = vmatprep.subr.mxu0 0.0
    %681 = vmatpush2.msra.mxu0 0.0
    %682 = vmatprep.subr.mxu0 0.0
    %683 = vmatpush2.msra.mxu0 0.0
    %684 = vmatprep.subr.mxu0 0.0
    %685 = vmatpush2.msra.mxu0 0.0
    %686 = vmatprep.subr.mxu0 0.0
    %687 = vmatpush2.msra.mxu0 0.0
    %688 = vmatprep.subr.mxu0 0.0
    %689 = vmatpush2.msra.mxu0 0.0
    %690 = vmatprep.subr.mxu0 0.0
    %691 = vmatpush2.msra.mxu0 0.0
    %692 = vmatprep.subr.mxu0 0.0
    %693 = vmatpush2.msra.mxu0 0.0
    %694 = vmatprep.subr.mxu0 0.0
    %695 = vmatpush2.msra.mxu0 0.0
    %696 = vmatprep.subr.mxu0 0.0
    %697 = vmatpush2.msra.mxu0 0.0
    %698 = vmatprep.subr.mxu0 0.0
    %699 = vmatpush2.msra.mxu0 0.0
    %700 = vmatprep.mubr.f32.mxu0 0.0
    %701 = vmatmul.mubr.f32.gmra.mxu0 %v622
    %v702 = vpop.f32.mrf.mxu0
    %v703 = vadd.f32 0.0, %v702
    %v704 = vpop.f32.mrf.mxu0
    %705 = vmatprep.mubr.f32.mxu0 0.0
    %706 = vmatmul.mubr.f32.gmra.mxu0 %v625
    %v707 = vpop.f32.mrf.mxu0
    %v708 = vadd.f32 0.0, %v707
    %v709 = vpop.f32.mrf.mxu0
    %710 = vmatprep.mubr.f32.mxu0 0.0
    %711 = vmatmul.mubr.f32.gmra.mxu0 %v628
    %v712 = vpop.f32.mrf.mxu0
    %v713 = vadd.f32 0.0, %v712
    %v714 = vpop.f32.mrf.mxu0
    %715 = vmatprep.mubr.f32.mxu0 0.0
    %716 = vmatmul.mubr.f32.gmra.mxu0 %v631
    %v717 = vpop.f32.mrf.mxu0
    %v718 = vadd.f32 0.0, %v717
    %v719 = vpop.f32.mrf.mxu0
    %720 = vdwg.mxu0
    %v721 = vmul.f32 %v304, %v703
    %v722 = vmul.f32 %v307, %v708
    %v723 = vmul.f32 %v312, %v713
    %v724 = vmul.f32 %v315, %v718
    %v725 = vadd.f32 %v721, %v43
    %v726 = vadd.f32 %v722, %v44
    %v727 = vadd.f32 %v723, %v45
    %v728 = vadd.f32 %v724, %v46
    %v729 = vmax.f32 %v725, 0.0
    %v730 = vmax.f32 %v726, 0.0
    %v731 = vmax.f32 %v727, 0.0
    %v732 = vmax.f32 %v728, 0.0
    %733 = vst [vmem:[#allocation2] sm:$0xff] %v729
    %734 = vst [vmem:[#allocation2 + $0x8] sm:$0xff] %v730
    %735 = vst [vmem:[#allocation2 + $0x10] sm:$0xff] %v731
    %736 = vst [vmem:[#allocation2 + $0x18] sm:$0xff] %v732
    // Predicated region
    $region50: #{tpu_custom_call.1} parent=1 // pred_check
      _
    $region51: #{tpu_custom_call.1} parent=1 // pred_check_branch
      %738 = sbr.rel (0) target = $region53
    $region52: #{tpu_custom_call.1} parent=1 // pred_region
      %s740 = ssub.s32 512, 512
      %741 = vsyncadd [#allocation3], %s740
      %s742 = sshll.u32 [#allocation2], 4
      %s743 = int_to_ptr.vmem [resolvable:$true] %s742
      %748 = dma.vmem_to_hbm [thread:$0]  %s743, 512, %s12, [#allocation3], 128, 128, 8
    $region53: #{tpu_custom_call.1} parent=1 // pred_fallthru
      _
    // Predicated region
    $region54: #{tpu_custom_call.1} parent=1 // pred_check
      _
    $region55: #{tpu_custom_call.1} parent=1 // pred_check_branch
      %750 = sbr.rel (0) target = $region57
    $region56: #{tpu_custom_call.1} parent=1 // pred_region
      %751 = dma.done [#allocation3], 512
    $region57: #{tpu_custom_call.1} parent=1 // pred_fallthru
      _
    %752 = vsyncpa [#allocation3], 1

</llo_original>
